<compile_context>
chip_gen: v5e
topology: v5e:2x2
jax: 0.10.0
libtpu: 0.0.40
codegen_flags: <defaults>
</compile_context>

<pallas_src>
import functools

import jax
import jax.numpy as jnp
import numpy as np
from jax.experimental import pallas as pl
from jax.experimental.pallas import tpu as pltpu

_TARGET_STEP_BYTES = 2 * 1024 * 1024  # ~2 MiB combined in+out per grid step


def _pad_channels_kernel(x_ref, o_ref, *, pad_elems, copy_elems):
    """x_ref: (bn, c*L) downsampled activations; o_ref: (bn, c_out*L).

    The trailing dim is the lane dim (lane-dense).  Zeros are written only
    into the two pad bands; the real channels are copied exactly once.  All
    slice offsets are static; for ResNet20 shapes they are multiples of 128,
    giving unmasked wide stores.
    """
    bn = o_ref.shape[0]
    if pad_elems > 0:
        zeros = jnp.zeros((bn, pad_elems), dtype=o_ref.dtype)
        o_ref[:, :pad_elems] = zeros                       # leading pad band
        o_ref[:, pad_elems + copy_elems:] = zeros          # trailing pad band
    o_ref[:, pad_elems:pad_elems + copy_elems] = x_ref[...]  # real channels


def _pick_block_n(n, bytes_per_image, target_bytes=_TARGET_STEP_BYTES):
    """Pick the per-grid-step batch block size.

    Preference order:
      * bn divides n (no ragged last block),
      * bn is a multiple of 8 (full sublane use; satisfies the (8,128) rule),
      * >= 2 grid steps so both v7x TensorCores get parallel work,
      * largest such bn with bn * bytes_per_image <= target (~1-2 MiB), so the
        fixed per-step overhead is amortized without blowing scoped VMEM.
    Small / non-multiple-of-8 batches fall back to the whole batch in one step
    (block shape == full array dim is always legal).
    """
    if n < 16 or n % 8 != 0:
        return n
    cands = [bn for bn in range(8, n // 2 + 1, 8) if n % bn == 0]
    if not cands:
        return n
    fitting = [bn for bn in cands if bn * bytes_per_image <= target_bytes]
    return max(fitting) if fitting else min(cands)


def lambda_layer(x, planes):
    """Pallas implementation of the slimmable_resnet20 LambdaLayer shortcut.

    Semantics: F.pad(x[:, :, ::2, ::2], (0,0,0,0, planes//4, planes//4)).
    """
    n, c, h, w = x.shape
    assert h % 2 == 0 and w % 2 == 0, "even spatial dims expected"
    pad = planes // 4
    h_out, w_out = h // 2, w // 2
    c_out = c + 2 * pad
    L = h_out * w_out

    # Stride-2 spatial decimation + flatten (C, H/2, W/2) into one lane-dense
    # trailing dim.  With allow_input_fusion this slice+reshape can be fused
    # into the pallas_call input (no x_ds materialization in HBM).
    x_ds = x[:, :, ::2, ::2].reshape(n, c * L)

    itemsize = jnp.dtype(x.dtype).itemsize
    bytes_per_image = (c * L + c_out * L) * itemsize
    bn = _pick_block_n(n, bytes_per_image)
    grid = (n // bn,)

    # Only needed if a fallback block is unusually large (never for ResNet20).
    vmem_needed = 2 * bn * bytes_per_image  # double-buffered in + out
    cp_kwargs = dict(
        dimension_semantics=("parallel",),
        allow_input_fusion=[True],
    )
    if vmem_needed > 12 * 1024 * 1024:
        cp_kwargs["vmem_limit_bytes"] = min(2 * vmem_needed, 64 * 1024 * 1024)

    # Traffic assuming the decimation fuses: read source once, write output.
    cost = pl.CostEstimate(
        flops=0,
        transcendentals=0,
        bytes_accessed=(n * c * h * w + n * c_out * L) * itemsize,
    )

    kernel = functools.partial(
        _pad_channels_kernel, pad_elems=pad * L, copy_elems=c * L)

    out_flat = pl.pallas_call(
        kernel,
        out_shape=jax.ShapeDtypeStruct((n, c_out * L), x.dtype),
        grid=grid,
        in_specs=[pl.BlockSpec((bn, c * L), lambda i: (i, 0))],
        out_specs=pl.BlockSpec((bn, c_out * L), lambda i: (i, 0)),
        compiler_params=pltpu.CompilerParams(**cp_kwargs),
        cost_estimate=cost,
    )(x_ds)

    # Free reshape back to NCHW.
    return out_flat.reshape(n, c_out, h_out, w_out)


def _reference(x, planes):
    pad = planes // 4
    ds = x[:, :, ::2, ::2]
    return jnp.pad(ds, ((0, 0), (pad, pad), (0, 0), (0, 0)), mode="constant")


if __name__ == "__main__":
    key = jax.random.PRNGKey(0)

    # Small shape consistent with a ResNet20 block transition: in_planes=4, planes=8.
    x = jax.random.normal(key, (2, 4, 16, 16), dtype=jnp.float32)
    planes = 8
    out = jax.block_until_ready(lambda_layer(x, planes))
    ref = _reference(x, planes)
    assert out.shape == ref.shape, (out.shape, ref.shape)
    np.testing.assert_allclose(np.asarray(out), np.asarray(ref), rtol=0, atol=0)

    # Second case exercising the multi-step, multiple-of-8 batch-block path
    # (16 -> 32 channel stage transition of ResNet20 at CIFAR spatial size).
    x2 = jax.random.normal(jax.random.PRNGKey(0), (16, 16, 32, 32), dtype=jnp.float32)
    out2 = jax.block_until_ready(lambda_layer(x2, 32))
    ref2 = _reference(x2, 32)
    assert out2.shape == ref2.shape, (out2.shape, ref2.shape)
    np.testing.assert_allclose(np.asarray(out2), np.asarray(ref2), rtol=0, atol=0)

    print("KERNEL_OK")
</pallas_src>

<mosaic_0001>
module attributes {stable_mosaic.version = 11 : i64} {
  func.func @_pad_channels_kernel(%arg0: i32, %arg1: memref<2x256xf32, #tpu.memory_space<vmem>>, %arg2: memref<2x512xf32, #tpu.memory_space<vmem>>) attributes {dimension_semantics = [#tpu.dimension_semantics<parallel>], iteration_bounds = array<i64: 1>, scalar_prefetch = 0 : i64, scratch_operands = 0 : i64, tpu.core_type = #tpu.core_type<tc>, window_params = [{transform_indices = @transform_0, window_bounds = array<i64: 2, 256>}, {transform_indices = @transform_1, window_bounds = array<i64: 2, 512>}]} {
    %cst = arith.constant 0.000000e+00 : f32
    %0 = vector.broadcast %cst : f32 to vector<2x128xf32>
    %c0 = arith.constant 0 : index
    %c0_0 = arith.constant 0 : index
    %1 = vector.load %arg2[%c0, %c0_0] : memref<2x512xf32, #tpu.memory_space<vmem>>, vector<2x128xf32>
    tpu.vector_store %arg2[%c0, %c0_0], %0 {strides = array<i32>} : memref<2x512xf32, #tpu.memory_space<vmem>>, vector<2x128xf32>,
    %c0_1 = arith.constant 0 : index
    %c384 = arith.constant 384 : index
    %2 = vector.load %arg2[%c0_1, %c384] : memref<2x512xf32, #tpu.memory_space<vmem>>, vector<2x128xf32>
    tpu.vector_store %arg2[%c0_1, %c384], %0 {strides = array<i32>} : memref<2x512xf32, #tpu.memory_space<vmem>>, vector<2x128xf32>,
    %c0_2 = arith.constant 0 : index
    %c0_3 = arith.constant 0 : index
    %3 = vector.load %arg1[%c0_2, %c0_3] : memref<2x256xf32, #tpu.memory_space<vmem>>, vector<2x256xf32>
    %c0_4 = arith.constant 0 : index
    %c128 = arith.constant 128 : index
    %4 = vector.load %arg2[%c0_4, %c128] : memref<2x512xf32, #tpu.memory_space<vmem>>, vector<2x256xf32>
    tpu.vector_store %arg2[%c0_4, %c128], %3 {strides = array<i32>} : memref<2x512xf32, #tpu.memory_space<vmem>>, vector<2x256xf32>,
    return
  }
  func.func @transform_0(%arg0: i32) -> (i32, i32) {
    %c0_i32 = arith.constant 0 : i32
    %c0_i32_0 = arith.constant 0 : i32
    return %arg0, %c0_i32 : i32, i32
  }
  func.func @transform_1(%arg0: i32) -> (i32, i32) {
    %c0_i32 = arith.constant 0 : i32
    %c0_i32_0 = arith.constant 0 : i32
    return %arg0, %c0_i32 : i32, i32
  }
}

</mosaic_0001>

<llo_original>
// kernel: tpu_custom_call.1
$region0: #{tpu_custom_call.1}
  #allocation0 [shape = 'u32[]', space=smem, size = 0x4, offset = 0x4, fixed_abs, tag = 'smem constant byte address 0x4 - core index']
  #allocation1 [shape = 'u32[72,128]{1,0:T(1,128)}', space=vmem, size = 0x9000, scoped, tag = 'internal scratch']
  %s0 = inlined_call_operand.hbm [shape: f32[2,256], index: 0, kind: input, shape index: {}]
  %s1 = inlined_call_operand.hbm [shape: f32[2,512], index: 1, kind: output, shape index: {}]
  %s2 = sld [smem:[#allocation0]]
  $region18: #{tpu_custom_call.1} parent=0
    _
  %s4 = ssub.s32 1, %s2
  %s5 = scalar_select 0, %s4, %s2
  $region1: #{tpu_custom_call.1} parent=0
    #allocation2 [shape = 'u8[2048]{0}', space=vmem, size = 0x800, scoped, tag = 'input window, operand 0, single buffered']
    #allocation3 [shape = 's32[1]{0}', space=sflag, size = 0x4, scoped, tag = 'scoped memory for tpu_custom_call.1']
    #allocation4 [shape = 's32[1]{0}', space=sflag, size = 0x4, scoped, tag = 'scoped memory for tpu_custom_call.1']
    #allocation5 [shape = 'u8[4096]{0}', space=vmem, size = 0x1000, scoped, tag = 'output window, operand 0, single buffered']
    %6 = vsyncpa [#allocation3], 0
    %7 = vsyncpa [#allocation4], 0
    // Predicated region
    $region2: #{tpu_custom_call.1} parent=1 // pred_check
      _
    $region3: #{tpu_custom_call.1} parent=1 // pred_check_branch
      %9 = sbr.rel (0) target = $region5
    $region4: #{tpu_custom_call.1} parent=1 // pred_region
      %11 = vsyncadd [#allocation3], 0
      %s13 = sshll.u32 %s0, 4
      %s14 = int_to_ptr.hbm [resolvable:$true] %s13
      %s15 = sshll.u32 [#allocation2], 4
      %s16 = int_to_ptr.vmem [resolvable:$true] %s15
      %18 = dma.hbm_to_vmem [thread:$0]  %s14, 64, %s16, [#allocation3]
    $region5: #{tpu_custom_call.1} parent=1 // pred_fallthru
      _
    // Predicated region
    $region6: #{tpu_custom_call.1} parent=1 // pred_check
      _
    $region7: #{tpu_custom_call.1} parent=1 // pred_check_branch
      %20 = sbr.rel (0) target = $region9
    $region8: #{tpu_custom_call.1} parent=1 // pred_region
      %22 = dma.done [#allocation3], 64
    $region9: #{tpu_custom_call.1} parent=1 // pred_fallthru
      _
    %23 = vst [vmem:[#allocation5] sm:$0x3] 0.0
    %24 = vst [vmem:[#allocation5 + $0x6] sm:$0x3] 0.0
    %v25 = vld [vmem:[#allocation2] sm:$0xf]
    %26 = vst [vmem:[#allocation5 + $0x2] sm:$0xf] %v25
    // Predicated region
    $region10: #{tpu_custom_call.1} parent=1 // pred_check
      _
    $region11: #{tpu_custom_call.1} parent=1 // pred_check_branch
      %28 = sbr.rel (0) target = $region13
    $region12: #{tpu_custom_call.1} parent=1 // pred_region
      %30 = vsyncadd [#allocation4], 0
      %s32 = sshll.u32 [#allocation5], 4
      %s33 = int_to_ptr.vmem [resolvable:$true] %s32
      %s34 = sshll.u32 %s1, 4
      %s35 = int_to_ptr.hbm [resolvable:$true] %s34
      %37 = dma.vmem_to_hbm [thread:$0]  %s33, 128, %s35, [#allocation4]
    $region13: #{tpu_custom_call.1} parent=1 // pred_fallthru
      _
    // Predicated region
    $region14: #{tpu_custom_call.1} parent=1 // pred_check
      _
    $region15: #{tpu_custom_call.1} parent=1 // pred_check_branch
      %39 = sbr.rel (0) target = $region17
    $region16: #{tpu_custom_call.1} parent=1 // pred_region
      %41 = dma.done [#allocation4], 128
    $region17: #{tpu_custom_call.1} parent=1 // pred_fallthru
      _
    %42 = vsyncpa [#allocation3], 1
    %43 = vsyncpa [#allocation4], 1

</llo_original>
